<compile_context>
chip_gen: v6e
topology: v6e:2x2x1
jax: 0.10.0
libtpu: 0.0.40
codegen_flags: <defaults>
</compile_context>

<pallas_src>
import jax
import jax.numpy as jnp
from jax.experimental import pallas as pl
from jax.experimental.pallas import tpu as pltpu


def _round_up(x, m):
    return ((x + m - 1) // m) * m


def _critic_kernel(x_ref, w1t_ref, b1_ref, w2_ref, b2_ref, o_ref):
    # First layer on the MXU, contracting the feature dim of both operands:
    #   ht[h, b] = sum_i w1t[h, i] * x[b, i]        -> (H, TB), batch on lanes.
    ht = jax.lax.dot_general(
        w1t_ref[...], x_ref[...],
        dimension_numbers=(((1,), (1,)), ((), ())),
        preferred_element_type=jnp.float32,
    )
    ht = ht + b1_ref[...]                            # (H, 1) broadcast over lanes
    # LeakyReLU (PyTorch default negative_slope = 0.01).
    ht = jnp.where(ht > 0, ht, 0.01 * ht)
    # Second layer (H -> 1): VPU multiply + sublane reduce.  Result is already
    # lane-major, so the store into the (1, TB) block is a dense, unmasked vst.
    y = jnp.sum(ht * w2_ref[...], axis=0, keepdims=True)     # (1, TB)
    o_ref[...] = (y + b2_ref[0, 0]).astype(o_ref.dtype)


def _choose_tile(batch, block_b):
    """Batch tile: multiple of 128 (lane-dense output row), capped at block_b.
    For multi-tile batches, prefer an even tile count (v7x 2-TC balance)."""
    tb = min(_round_up(block_b, 128), _round_up(batch, 128))
    n = pl.cdiv(batch, tb)
    if n > 1 and n % 2 == 1:
        tb = _round_up(pl.cdiv(batch, n + 1), 128)
    return tb, pl.cdiv(batch, tb)


def critic_forward(x, w1, b1, w2, b2, *, block_b=2048):
    """Critic forward.

    x  : (B, in_dim)        activations (f32 or bf16)
    w1 : (in_dim, hidden)   first Linear weight (input-major)
    b1 : (hidden,)          first Linear bias
    w2 : (hidden,)          second Linear weight (output dim == 1)
    b2 : scalar / (1,)      second Linear bias
    returns (B, 1) float32, matching nn.Linear -> LeakyReLU -> nn.Linear.
    """
    B, in_dim = x.shape
    H = w1.shape[1]

    # Tiny weight-layout massaging for the batch-on-lanes kernel.
    w1t = jnp.asarray(w1).T.astype(x.dtype)               # (H, in_dim)
    b1c = jnp.asarray(b1, jnp.float32).reshape(H, 1)       # (H, 1)
    w2c = jnp.asarray(w2, jnp.float32).reshape(H, 1)       # (H, 1)
    b2s = jnp.asarray(b2, jnp.float32).reshape(1, 1)       # (1, 1) -> SMEM

    TB, num_tiles = _choose_tile(B, block_b)

    out_row = pl.pallas_call(
        _critic_kernel,
        out_shape=jax.ShapeDtypeStruct((1, num_tiles * TB), jnp.float32),
        grid=(num_tiles,),
        in_specs=[
            # x: tiled over batch.  A partial last block reads garbage rows;
            # those only feed output columns the wrapper discards.
            pl.BlockSpec((TB, in_dim), lambda i: (i, 0)),
            # Weights / biases: constant index maps -> resident across steps.
            pl.BlockSpec((H, in_dim), lambda i: (0, 0)),
            pl.BlockSpec((H, 1), lambda i: (0, 0)),
            pl.BlockSpec((H, 1), lambda i: (0, 0)),
            # Scalar second-layer bias in SMEM.
            pl.BlockSpec(memory_space=pltpu.MemorySpace.SMEM),
        ],
        # Lane-dense output row: each grid step writes one (1, TB) segment.
        out_specs=pl.BlockSpec((1, TB), lambda i: (0, i)),
        compiler_params=pltpu.CompilerParams(
            dimension_semantics=("parallel",),
        ),
    )(x, w1t, b1c, w2c, b2s)

    return out_row[0, :B].reshape(B, 1)


def init_critic_params(key, state_dim, discrete_dim, continuous_dim, hidden_dim=64):
    """Deterministic synthetic init (uniform, PyTorch-Linear-style fan-in bound)."""
    in_dim = state_dim + discrete_dim + continuous_dim
    k1, k2, k3, k4 = jax.random.split(key, 4)
    bound1 = 1.0 / jnp.sqrt(jnp.float32(in_dim))
    bound2 = 1.0 / jnp.sqrt(jnp.float32(hidden_dim))
    w1 = jax.random.uniform(k1, (in_dim, hidden_dim), jnp.float32, -bound1, bound1)
    b1 = jax.random.uniform(k2, (hidden_dim,), jnp.float32, -bound1, bound1)
    w2 = jax.random.uniform(k3, (hidden_dim,), jnp.float32, -bound2, bound2)
    b2 = jax.random.uniform(k4, (1,), jnp.float32, -bound2, bound2)
    return w1, b1, w2, b2


def _reference(x, w1, b1, w2, b2):
    h = x.astype(jnp.float32) @ w1 + b1
    h = jnp.where(h > 0, h, 0.01 * h)
    return h @ w2.reshape(-1, 1) + b2.reshape(1, 1)


if __name__ == "__main__":
    state_dim, discrete_dim, continuous_dim = 12, 4, 4
    hidden_dim = 32
    in_dim = state_dim + discrete_dim + continuous_dim

    key = jax.random.PRNGKey(0)
    kx, kp, kx2 = jax.random.split(key, 3)
    w1, b1, w2, b2 = init_critic_params(
        kp, state_dim, discrete_dim, continuous_dim, hidden_dim
    )

    # Small single-tile check (partial input block: 8 valid rows of a 128 tile).
    batch = 8
    x = jax.random.normal(kx, (batch, in_dim), dtype=jnp.float32)
    out = jax.block_until_ready(critic_forward(x, w1, b1, w2, b2))
    y_ref = _reference(x, w1, b1, w2, b2)
    assert out.shape == (batch, 1)
    assert jnp.allclose(out, y_ref, atol=1e-4, rtol=1e-4)

    # Multi-tile + ragged-boundary path (no wrapper padding; 2 even tiles).
    batch2 = 2050
    x2 = jax.random.normal(kx2, (batch2, in_dim), dtype=jnp.float32)
    out2 = jax.block_until_ready(critic_forward(x2, w1, b1, w2, b2))
    y_ref2 = _reference(x2, w1, b1, w2, b2)
    assert out2.shape == (batch2, 1)
    assert jnp.allclose(out2, y_ref2, atol=1e-4, rtol=1e-4)

    print("KERNEL_OK")
</pallas_src>

<mosaic_0001>
module attributes {stable_mosaic.version = 11 : i64} {
  func.func @_critic_kernel(%arg0: i32, %arg1: memref<128x20xf32, #tpu.memory_space<vmem>>, %arg2: memref<32x20xf32, #tpu.memory_space<vmem>>, %arg3: memref<32x1xf32, #tpu.memory_space<vmem>>, %arg4: memref<32x1xf32, #tpu.memory_space<vmem>>, %arg5: memref<1x1xf32, #tpu.memory_space<smem>>, %arg6: memref<1x128xf32, #tpu.memory_space<vmem>>) attributes {dimension_semantics = [#tpu.dimension_semantics<parallel>], iteration_bounds = array<i64: 1>, scalar_prefetch = 0 : i64, scratch_operands = 0 : i64, tpu.core_type = #tpu.core_type<tc>, window_params = [{transform_indices = @transform_0, window_bounds = array<i64: 128, 20>}, {pipeline_mode = #tpu.pipeline_mode<synchronous>, transform_indices = @transform_1, window_bounds = array<i64: 32, 20>}, {pipeline_mode = #tpu.pipeline_mode<synchronous>, transform_indices = @transform_2, window_bounds = array<i64: 32, 1>}, {pipeline_mode = #tpu.pipeline_mode<synchronous>, transform_indices = @transform_3, window_bounds = array<i64: 32, 1>}, {transform_indices = @transform_4, window_bounds = array<i64: 1, 1>}, {transform_indices = @transform_5, window_bounds = array<i64: 1, 128>}]} {
    %c0 = arith.constant 0 : index
    %c0_0 = arith.constant 0 : index
    %0 = vector.load %arg2[%c0, %c0_0] : memref<32x20xf32, #tpu.memory_space<vmem>>, vector<32x20xf32>
    %c0_1 = arith.constant 0 : index
    %c0_2 = arith.constant 0 : index
    %1 = vector.load %arg1[%c0_1, %c0_2] : memref<128x20xf32, #tpu.memory_space<vmem>>, vector<128x20xf32>
    %cst = arith.constant dense<0.000000e+00> : vector<32x128xf32>
    %2 = tpu.matmul %0, %1, %cst {dimension_numbers = #tpu.dot_dimension_numbers<[1], [1], [0], [0], [0, 0, 1, 0], [], []>} : vector<32x20xf32>, vector<128x20xf32>, vector<32x128xf32> -> vector<32x128xf32>
    %c0_3 = arith.constant 0 : index
    %c0_4 = arith.constant 0 : index
    %3 = vector.load %arg3[%c0_3, %c0_4] : memref<32x1xf32, #tpu.memory_space<vmem>>, vector<32x1xf32>
    %4 = vector.broadcast %3 : vector<32x1xf32> to vector<32x128xf32>
    %5 = arith.addf %2, %4 : vector<32x128xf32>
    %cst_5 = arith.constant 0.000000e+00 : f32
    %6 = vector.broadcast %cst_5 : f32 to vector<32x128xf32>
    %7 = arith.cmpf ogt, %5, %6 : vector<32x128xf32>
    %cst_6 = arith.constant 0.00999999977 : f32
    %8 = vector.broadcast %cst_6 : f32 to vector<32x128xf32>
    %9 = arith.mulf %8, %5 : vector<32x128xf32>
    %10 = arith.select %7, %5, %9 : vector<32x128xi1>, vector<32x128xf32>
    %c0_7 = arith.constant 0 : index
    %c0_8 = arith.constant 0 : index
    %11 = vector.load %arg4[%c0_7, %c0_8] : memref<32x1xf32, #tpu.memory_space<vmem>>, vector<32x1xf32>
    %12 = vector.broadcast %11 : vector<32x1xf32> to vector<32x128xf32>
    %13 = arith.mulf %10, %12 : vector<32x128xf32>
    %cst_9 = arith.constant dense<0.000000e+00> : vector<128xf32>
    %14 = vector.multi_reduction <add>, %13, %cst_9 [0] : vector<32x128xf32> to vector<128xf32>
    %15 = vector.shape_cast %14 : vector<128xf32> to vector<1x128xf32>
    %c0_10 = arith.constant 0 : index
    %c0_11 = arith.constant 0 : index
    %16 = memref.load %arg5[%c0_10, %c0_11] : memref<1x1xf32, #tpu.memory_space<smem>>
    %17 = vector.broadcast %16 : f32 to vector<1x128xf32>
    %18 = arith.addf %15, %17 : vector<1x128xf32>
    %c0_12 = arith.constant 0 : index
    %c0_13 = arith.constant 0 : index
    %19 = vector.load %arg6[%c0_12, %c0_13] : memref<1x128xf32, #tpu.memory_space<vmem>>, vector<1x128xf32>
    tpu.vector_store %arg6[%c0_12, %c0_13], %18 {strides = array<i32>} : memref<1x128xf32, #tpu.memory_space<vmem>>, vector<1x128xf32>,
    return
  }
  func.func @transform_0(%arg0: i32) -> (i32, i32) {
    %c0_i32 = arith.constant 0 : i32
    %c0_i32_0 = arith.constant 0 : i32
    return %arg0, %c0_i32 : i32, i32
  }
  func.func @transform_1(%arg0: i32) -> (i32, i32) {
    %c0_i32 = arith.constant 0 : i32
    %c0_i32_0 = arith.constant 0 : i32
    %c0_i32_1 = arith.constant 0 : i32
    return %c0_i32, %c0_i32_0 : i32, i32
  }
  func.func @transform_2(%arg0: i32) -> (i32, i32) {
    %c0_i32 = arith.constant 0 : i32
    %c0_i32_0 = arith.constant 0 : i32
    %c0_i32_1 = arith.constant 0 : i32
    return %c0_i32, %c0_i32_0 : i32, i32
  }
  func.func @transform_3(%arg0: i32) -> (i32, i32) {
    %c0_i32 = arith.constant 0 : i32
    %c0_i32_0 = arith.constant 0 : i32
    %c0_i32_1 = arith.constant 0 : i32
    return %c0_i32, %c0_i32_0 : i32, i32
  }
  func.func @transform_4(%arg0: i32) -> (i32, i32) {
    %c0_i32 = arith.constant 0 : i32
    %c0_i32_0 = arith.constant 0 : i32
    %c0_i32_1 = arith.constant 0 : i32
    return %c0_i32, %c0_i32_0 : i32, i32
  }
  func.func @transform_5(%arg0: i32) -> (i32, i32) {
    %c0_i32 = arith.constant 0 : i32
    %c0_i32_0 = arith.constant 0 : i32
    return %c0_i32, %arg0 : i32, i32
  }
}

</mosaic_0001>

<llo_original>
// kernel: tpu_custom_call.1
$region0: #{tpu_custom_call.1}
  #allocation0 [shape = 'u32[]', space=smem, size = 0x4, offset = 0x4, fixed_abs, tag = 'smem constant byte address 0x4 - core index']
  #allocation1 [shape = 'u32[144,128]{1,0:T(1,128)}', space=vmem, size = 0x12000, scoped, tag = 'internal scratch']
  #allocation2 [shape = 'f32[1,1]{1,0:T(1,128)S(6)}', space=smem, size = 0x200, scoped, tag = 'scoped memory for tpu_custom_call.1']
  %s0 = inlined_call_operand.vmem [shape: f32[8,20], index: 0, kind: input, shape index: {}]
  %s1 = inlined_call_operand.vmem [shape: f32[32,20], index: 1, kind: input, shape index: {}]
  %s2 = inlined_call_operand.vmem [shape: f32[32,1], index: 2, kind: input, shape index: {}]
  %s3 = inlined_call_operand.vmem [shape: f32[32,1], index: 3, kind: input, shape index: {}]
  %s4 = inlined_call_operand.<no memory space> [shape: f32[1,1], index: 4, kind: input, shape index: {}]
  %s5 = inlined_call_operand.hbm [shape: f32[1,128], index: 5, kind: output, shape index: {}]
  %s6 = sld [smem:[#allocation0]]
  $region30: #{tpu_custom_call.1} parent=0
    _
  %s8 = ssub.s32 1, %s6
  %s9 = scalar_select 0, %s8, %s6
  %10 = sst [smem:[#allocation2]] %s4
  $region1: #{tpu_custom_call.1} parent=0
    #allocation3 [shape = 'u8[512]{0}', space=vmem, size = 0x400, scoped, tag = 'output window, operand 0, single buffered']
    #allocation4 [shape = 's32[1]{0}', space=sflag, size = 0x4, scoped, tag = 'scoped memory for tpu_custom_call.1']
    %11 = vsyncpa [#allocation4], 0
    // Predicated region
    $region2: #{tpu_custom_call.1} parent=1 // pred_check
      _
    $region3: #{tpu_custom_call.1} parent=1 // pred_check_branch
      %13 = sbr.rel (0) target = $region5
    $region4: #{tpu_custom_call.1} parent=1 // pred_region
      _
    $region5: #{tpu_custom_call.1} parent=1 // pred_fallthru
      _
    // Predicated region
    $region6: #{tpu_custom_call.1} parent=1 // pred_check
      _
    $region7: #{tpu_custom_call.1} parent=1 // pred_check_branch
      %15 = sbr.rel (0) target = $region9
    $region8: #{tpu_custom_call.1} parent=1 // pred_region
      _
    $region9: #{tpu_custom_call.1} parent=1 // pred_fallthru
      _
    // Predicated region
    $region10: #{tpu_custom_call.1} parent=1 // pred_check
      _
    $region11: #{tpu_custom_call.1} parent=1 // pred_check_branch
      %17 = sbr.rel (0) target = $region13
    $region12: #{tpu_custom_call.1} parent=1 // pred_region
      _
    $region13: #{tpu_custom_call.1} parent=1 // pred_fallthru
      _
    // Predicated region
    $region14: #{tpu_custom_call.1} parent=1 // pred_check
      _
    $region15: #{tpu_custom_call.1} parent=1 // pred_check_branch
      %19 = sbr.rel (0) target = $region17
    $region16: #{tpu_custom_call.1} parent=1 // pred_region
      _
    $region17: #{tpu_custom_call.1} parent=1 // pred_fallthru
      _
    // Predicated region
    $region18: #{tpu_custom_call.1} parent=1 // pred_check
      _
    $region19: #{tpu_custom_call.1} parent=1 // pred_check_branch
      %21 = sbr.rel (0) target = $region21
    $region20: #{tpu_custom_call.1} parent=1 // pred_region
      _
    $region21: #{tpu_custom_call.1} parent=1 // pred_fallthru
      _
    %v22 = vld [vmem:[%s1] sm:$0xff]
    %v23 = vld [vmem:[%s1 + $0x8] sm:$0xff]
    %v24 = vld [vmem:[%s1 + $0x10] sm:$0xff]
    %v25 = vld [vmem:[%s1 + $0x18] sm:$0xff]
    %v26 = vld [vmem:[%s0] sm:$0xff]
    %v27 = vld [vmem:[%s0 + $0x8] sm:$0xff]
    %v28 = vld [vmem:[%s0 + $0x10] sm:$0xff]
    %v29 = vld [vmem:[%s0 + $0x18] sm:$0xff]
    %v30 = vld [vmem:[%s0 + $0x20] sm:$0xff]
    %v31 = vld [vmem:[%s0 + $0x28] sm:$0xff]
    %v32 = vld [vmem:[%s0 + $0x30] sm:$0xff]
    %v33 = vld [vmem:[%s0 + $0x38] sm:$0xff]
    %v34 = vld [vmem:[%s0 + $0x40] sm:$0xff]
    %v35 = vld [vmem:[%s0 + $0x48] sm:$0xff]
    %v36 = vld [vmem:[%s0 + $0x50] sm:$0xff]
    %v37 = vld [vmem:[%s0 + $0x58] sm:$0xff]
    %v38 = vld [vmem:[%s0 + $0x60] sm:$0xff]
    %v39 = vld [vmem:[%s0 + $0x68] sm:$0xff]
    %v40 = vld [vmem:[%s0 + $0x70] sm:$0xff]
    %v41 = vld [vmem:[%s0 + $0x78] sm:$0xff]
    %v42 = vld [vmem:[%s2] sm:$0xff]
    %v43 = vld [vmem:[%s2 + $0x8] sm:$0xff]
    %v44 = vld [vmem:[%s2 + $0x10] sm:$0xff]
    %v45 = vld [vmem:[%s2 + $0x18] sm:$0xff]
    %47 = vset.pattern.permute.xlu0 0
    %48 = vperm.xlu0 %47, %v42
    %v49 = vpop.permute.xlu0 %48
    %52 = vset.pattern.permute.xlu0 0
    %53 = vperm.xlu0 %52, %v43
    %v54 = vpop.permute.xlu0 %53
    %57 = vset.pattern.permute.xlu0 0
    %58 = vperm.xlu0 %57, %v44
    %v59 = vpop.permute.xlu0 %58
    %62 = vset.pattern.permute.xlu0 0
    %63 = vperm.xlu0 %62, %v45
    %v64 = vpop.permute.xlu0 %63
    %vm66 = vcmask 162816
    %v68 = vsel %vm66, %v22, 0
    %v71 = vsel %vm66, %v23, 0
    %v74 = vsel %vm66, %v24, 0
    %v77 = vsel %vm66, %v25, 0
    %v80 = vsel %vm66, %v26, 0
    %v83 = vsel %vm66, %v27, 0
    %v86 = vsel %vm66, %v28, 0
    %v89 = vsel %vm66, %v29, 0
    %v92 = vsel %vm66, %v30, 0
    %v95 = vsel %vm66, %v31, 0
    %v98 = vsel %vm66, %v32, 0
    %v101 = vsel %vm66, %v33, 0
    %v104 = vsel %vm66, %v34, 0
    %v107 = vsel %vm66, %v35, 0
    %v110 = vsel %vm66, %v36, 0
    %v113 = vsel %vm66, %v37, 0
    %v116 = vsel %vm66, %v38, 0
    %v119 = vsel %vm66, %v39, 0
    %v122 = vsel %vm66, %v40, 0
    %v125 = vsel %vm66, %v41, 0
    %127 = vmatprep.subr.mxu0 0.0
    %128 = vmatpush1.xpose.msra.mxu0 %v125
    %129 = vmatprep.subr.mxu0 0.0
    %130 = vmatpush1.xpose.msra.mxu0 %v122
    %131 = vmatprep.subr.mxu0 0.0
    %132 = vmatpush1.xpose.msra.mxu0 %v119
    %133 = vmatprep.subr.mxu0 0.0
    %134 = vmatpush1.xpose.msra.mxu0 %v116
    %135 = vmatprep.subr.mxu0 0.0
    %136 = vmatpush1.xpose.msra.mxu0 %v113
    %137 = vmatprep.subr.mxu0 0.0
    %138 = vmatpush1.xpose.msra.mxu0 %v110
    %139 = vmatprep.subr.mxu0 0.0
    %140 = vmatpush1.xpose.msra.mxu0 %v107
    %141 = vmatprep.subr.mxu0 0.0
    %142 = vmatpush1.xpose.msra.mxu0 %v104
    %143 = vmatprep.subr.mxu0 0.0
    %144 = vmatpush1.xpose.msra.mxu0 %v101
    %145 = vmatprep.subr.mxu0 0.0
    %146 = vmatpush1.xpose.msra.mxu0 %v98
    %147 = vmatprep.subr.mxu0 0.0
    %148 = vmatpush1.xpose.msra.mxu0 %v95
    %149 = vmatprep.subr.mxu0 0.0
    %150 = vmatpush1.xpose.msra.mxu0 %v92
    %151 = vmatprep.subr.mxu0 0.0
    %152 = vmatpush1.xpose.msra.mxu0 %v89
    %153 = vmatprep.subr.mxu0 0.0
    %154 = vmatpush1.xpose.msra.mxu0 %v86
    %155 = vmatprep.subr.mxu0 0.0
    %156 = vmatpush1.xpose.msra.mxu0 %v83
    %157 = vmatprep.subr.mxu0 0.0
    %158 = vmatpush1.xpose.msra.mxu0 %v80
    %159 = vmatprep.subr.mxu0 0.0
    %160 = vmatpush2.xpose.msra.mxu0 0.0
    %161 = vmatprep.subr.mxu0 0.0
    %162 = vmatpush2.xpose.msra.mxu0 0.0
    %163 = vmatprep.subr.mxu0 0.0
    %164 = vmatpush2.xpose.msra.mxu0 0.0
    %165 = vmatprep.subr.mxu0 0.0
    %166 = vmatpush2.xpose.msra.mxu0 0.0
    %167 = vmatprep.subr.mxu0 0.0
    %168 = vmatpush2.xpose.msra.mxu0 0.0
    %169 = vmatprep.subr.mxu0 0.0
    %170 = vmatpush2.xpose.msra.mxu0 0.0
    %171 = vmatprep.subr.mxu0 0.0
    %172 = vmatpush2.xpose.msra.mxu0 0.0
    %173 = vmatprep.subr.mxu0 0.0
    %174 = vmatpush2.xpose.msra.mxu0 0.0
    %175 = vmatprep.subr.mxu0 0.0
    %176 = vmatpush2.xpose.msra.mxu0 0.0
    %177 = vmatprep.subr.mxu0 0.0
    %178 = vmatpush2.xpose.msra.mxu0 0.0
    %179 = vmatprep.subr.mxu0 0.0
    %180 = vmatpush2.xpose.msra.mxu0 0.0
    %181 = vmatprep.subr.mxu0 0.0
    %182 = vmatpush2.xpose.msra.mxu0 0.0
    %183 = vmatprep.subr.mxu0 0.0
    %184 = vmatpush2.xpose.msra.mxu0 0.0
    %185 = vmatprep.subr.mxu0 0.0
    %186 = vmatpush2.xpose.msra.mxu0 0.0
    %187 = vmatprep.subr.mxu0 0.0
    %188 = vmatpush2.xpose.msra.mxu0 0.0
    %189 = vmatprep.subr.mxu0 0.0
    %190 = vmatpush2.xpose.msra.mxu0 0.0
    %191 = vmatprep.mubr.f32.mxu0 0.0
    %192 = vmatmul.mubr.f32.gmra.mxu0 %v68
    %v193 = vpop.f32.mrf.mxu0
    %v194 = vadd.f32 %v49, %v193
    %v195 = vpop.f32.mrf.mxu0
    %196 = vmatprep.mubr.f32.mxu0 0.0
    %197 = vmatmul.mubr.f32.gmra.mxu0 %v71
    %v198 = vpop.f32.mrf.mxu0
    %v199 = vadd.f32 %v54, %v198
    %v200 = vpop.f32.mrf.mxu0
    %201 = vmatprep.mubr.f32.mxu0 0.0
    %202 = vmatmul.mubr.f32.gmra.mxu0 %v74
    %v203 = vpop.f32.mrf.mxu0
    %v204 = vadd.f32 %v59, %v203
    %v205 = vpop.f32.mrf.mxu0
    %206 = vmatprep.mubr.f32.mxu0 0.0
    %207 = vmatmul.mubr.f32.gmra.mxu0 %v77
    %v208 = vpop.f32.mrf.mxu0
    %v209 = vadd.f32 %v64, %v208
    %v210 = vpop.f32.mrf.mxu0
    %211 = vdwg.mxu0
    %vm212 = vcmp.gt.f32.partialorder %v194, 0.0
    %vm213 = vcmp.gt.f32.partialorder %v199, 0.0
    %vm214 = vcmp.gt.f32.partialorder %v204, 0.0
    %vm215 = vcmp.gt.f32.partialorder %v209, 0.0
    %v216 = vmul.f32 %v194, 0.01
    %v217 = vmul.f32 %v199, 0.01
    %v218 = vmul.f32 %v204, 0.01
    %v219 = vmul.f32 %v209, 0.01
    %v220 = vsel %vm212, %v194, %v216
    %v221 = vsel %vm213, %v199, %v217
    %v222 = vsel %vm214, %v204, %v218
    %v223 = vsel %vm215, %v209, %v219
    %v224 = vld [vmem:[%s3] sm:$0xff]
    %v225 = vld [vmem:[%s3 + $0x8] sm:$0xff]
    %v226 = vld [vmem:[%s3 + $0x10] sm:$0xff]
    %v227 = vld [vmem:[%s3 + $0x18] sm:$0xff]
    %229 = vset.pattern.permute.xlu0 0
    %230 = vperm.xlu0 %229, %v224
    %v231 = vpop.permute.xlu0 %230
    %234 = vset.pattern.permute.xlu0 0
    %235 = vperm.xlu0 %234, %v225
    %v236 = vpop.permute.xlu0 %235
    %239 = vset.pattern.permute.xlu0 0
    %240 = vperm.xlu0 %239, %v226
    %v241 = vpop.permute.xlu0 %240
    %244 = vset.pattern.permute.xlu0 0
    %245 = vperm.xlu0 %244, %v227
    %v246 = vpop.permute.xlu0 %245
    %v248 = vmul.f32 %v220, %v231
    %v249 = vmul.f32 %v221, %v236
    %v250 = vmul.f32 %v222, %v241
    %v251 = vmul.f32 %v223, %v246
    %v252 = vadd.f32 %v248, %v249
    %v253 = vadd.f32 %v252, %v250
    %v254 = vadd.f32 %v253, %v251
    %v255 = vrot.slane %v254, 4
    %v256 = vadd.f32 %v254, %v255
    %v257 = vrot.slane %v256, 2
    %v258 = vadd.f32 %v256, %v257
    %v259 = vrot.slane %v258, 1
    %v260 = vadd.f32 %v258, %v259
    %s261 = sld [smem:[#allocation2]]
    %v262 = vstv %s261
    %v263 = vadd.f32 %v260, %v262
    %264 = vst [vmem:[#allocation3] sm:$0x1] %v263
    // Predicated region
    $region22: #{tpu_custom_call.1} parent=1 // pred_check
      _
    $region23: #{tpu_custom_call.1} parent=1 // pred_check_branch
      %266 = sbr.rel (0) target = $region25
    $region24: #{tpu_custom_call.1} parent=1 // pred_region
      %s268 = ssub.s32 16, 16
      %269 = vsyncadd [#allocation4], %s268
      %s271 = sshll.u32 [#allocation3], 4
      %s272 = int_to_ptr.vmem [resolvable:$true] %s271
      %274 = dma.vmem_to_hbm [thread:$0]  %s272, 16, %s5, [#allocation4]
    $region25: #{tpu_custom_call.1} parent=1 // pred_fallthru
      _
    // Predicated region
    $region26: #{tpu_custom_call.1} parent=1 // pred_check
      _
    $region27: #{tpu_custom_call.1} parent=1 // pred_check_branch
      %276 = sbr.rel (0) target = $region29
    $region28: #{tpu_custom_call.1} parent=1 // pred_region
      %277 = dma.done [#allocation4], 16
    $region29: #{tpu_custom_call.1} parent=1 // pred_fallthru
      _
    %278 = vsyncpa [#allocation4], 1

</llo_original>
